<compile_context>
chip_gen: v6e
topology: v6e:2x2x1
jax: 0.10.0
libtpu: 0.0.40
codegen_flags: <defaults>
</compile_context>

<pallas_src>
import functools
import math

import jax
import jax.numpy as jnp
import numpy as np
from jax.experimental import pallas as pl
from jax.experimental.pallas import tpu as pltpu


# --------------------------------------------------------------------------
# small helpers
# --------------------------------------------------------------------------

def _round_up(x, m):
    return ((x + m - 1) // m) * m


def _row_block(M, target=1024):
    """Pick a row tile (multiple of 8) and the padded row count.
    target=1024 is the v5e/v6e HBM-roofline sweet spot; drop to 512 on v7x if
    vmem_limit_bytes is not raised."""
    bm = min(target, _round_up(M, 8))
    Mp = _round_up(M, bm)
    return bm, Mp


def _bf16(x):
    return x.astype(jnp.bfloat16)


def _layernorm(y, gamma, beta, eps):
    mu = jnp.mean(y, axis=-1, keepdims=True)
    d = y - mu
    var = jnp.mean(d * d, axis=-1, keepdims=True)
    return d * jax.lax.rsqrt(var + eps) * gamma + beta


_VMEM_64MB = 64 * 1024 * 1024


# --------------------------------------------------------------------------
# Kernel 1: positional-embedding MLP (3 fused matmuls)
# --------------------------------------------------------------------------

def _pos_mlp_kernel(x_ref, w1_ref, b1_ref, w2_ref, b2_ref, w3_ref, b3_ref, o_ref):
    x = x_ref[...].astype(jnp.float32)                       # (bm, 10)
    # first layer stays f32 (tiny K=10); later layers use bf16 MXU weights
    h = jnp.dot(x, w1_ref[...], preferred_element_type=jnp.float32) + b1_ref[...]
    h = jnp.maximum(h, 0.0)
    h = jnp.dot(_bf16(h), w2_ref[...], preferred_element_type=jnp.float32) + b2_ref[...]
    h = jnp.maximum(h, 0.0)
    y = jnp.dot(_bf16(h), w3_ref[...], preferred_element_type=jnp.float32) + b3_ref[...]
    o_ref[...] = y.astype(o_ref.dtype)


def mlp_pos_embed(x, p):
    B, L, K = x.shape
    D = p["w3"].shape[1]
    M = B * L
    x2 = x.reshape(M, K)
    bm, Mp = _row_block(M)
    if Mp != M:
        x2 = jnp.pad(x2, ((0, Mp - M), (0, 0)))
    out = pl.pallas_call(
        _pos_mlp_kernel,
        out_shape=jax.ShapeDtypeStruct((Mp, D), x.dtype),
        grid=(Mp // bm,),
        in_specs=[
            pl.BlockSpec((bm, K), lambda i: (i, 0)),
            pl.BlockSpec(p["w1"].shape, lambda i: (0, 0)),
            pl.BlockSpec(p["b1"].shape, lambda i: (0, 0)),
            pl.BlockSpec(p["w2"].shape, lambda i: (0, 0)),
            pl.BlockSpec(p["b2"].shape, lambda i: (0, 0)),
            pl.BlockSpec(p["w3"].shape, lambda i: (0, 0)),
            pl.BlockSpec(p["b3"].shape, lambda i: (0, 0)),
        ],
        out_specs=pl.BlockSpec((bm, D), lambda i: (i, 0)),
        compiler_params=pltpu.CompilerParams(dimension_semantics=("parallel",)),
    )(x2, p["w1"], p["b1"], _bf16(p["w2"]), p["b2"], _bf16(p["w3"]), p["b3"])
    return out[:M].reshape(B, L, D)


# --------------------------------------------------------------------------
# Kernel 2: fused self-attention block (+ residual + LayerNorm1)
#           whole-D QKV / out projections, grid = (batch, query-row tiles)
# --------------------------------------------------------------------------

def _self_attn_kernel(q_ref, k_ref, v_ref, res_ref,
                      wq_ref, bq_ref, wk_ref, bk_ref, wv_ref, bv_ref,
                      wo_ref, bo_ref, g_ref, beta_ref, o_ref,
                      *, nhead, scale, eps):
    D = q_ref.shape[-1]
    Dh = D // nhead
    # hoisted single bf16 casts of the activations
    qin = _bf16(q_ref[0])                                    # (tq, D)  q/k input (q rows)
    kin = _bf16(k_ref[0])                                    # (L,  D)  q/k input (all rows)
    vin = _bf16(v_ref[0])                                    # (L,  D)  value input
    res = res_ref[0].astype(jnp.float32)                     # (tq, D)  residual (query)

    # full-width projections on the MXU (f32 accumulation)
    q = jnp.dot(qin, wq_ref[...], preferred_element_type=jnp.float32) + bq_ref[...]
    k = jnp.dot(kin, wk_ref[...], preferred_element_type=jnp.float32) + bk_ref[...]
    v = jnp.dot(vin, wv_ref[...], preferred_element_type=jnp.float32) + bv_ref[...]
    q = _bf16(q * scale)
    k = _bf16(k)
    v = _bf16(v)

    heads = []
    for h in range(nhead):                                   # static unroll; per-head SDPA
        sl = slice(h * Dh, (h + 1) * Dh)
        s = jax.lax.dot_general(q[:, sl], k[:, sl],
                                (((1,), (1,)), ((), ())),
                                preferred_element_type=jnp.float32)      # (tq, L)
        s = s - jnp.max(s, axis=-1, keepdims=True)
        p = jnp.exp(s)
        p = p * pl.reciprocal(jnp.sum(p, axis=-1, keepdims=True), approx=True)
        heads.append(jnp.dot(_bf16(p), v[:, sl],
                             preferred_element_type=jnp.float32))        # (tq, Dh)
    o = _bf16(jnp.concatenate(heads, axis=-1))               # (tq, D)
    y = jnp.dot(o, wo_ref[...], preferred_element_type=jnp.float32) + bo_ref[...] + res
    o_ref[0] = _layernorm(y, g_ref[...], beta_ref[...], eps).astype(o_ref.dtype)


def self_attn_block(qk_in, x, p, ln_g, ln_b, nhead, eps=1e-5):
    B, L, D = x.shape
    scale = 1.0 / math.sqrt(D // nhead)
    tq = min(256, _round_up(L, 8))
    Lp = _round_up(L, tq)
    nq = Lp // tq
    qk_pad = qk_in if Lp == L else jnp.pad(qk_in, ((0, 0), (0, Lp - L), (0, 0)))
    x_pad = x if Lp == L else jnp.pad(x, ((0, 0), (0, Lp - L), (0, 0)))

    def wfull(s):
        return pl.BlockSpec(s, lambda b, qi: (0, 0))

    out = pl.pallas_call(
        functools.partial(_self_attn_kernel, nhead=nhead, scale=scale, eps=eps),
        out_shape=jax.ShapeDtypeStruct((B, Lp, D), x.dtype),
        grid=(B, nq),
        in_specs=[
            pl.BlockSpec((1, tq, D), lambda b, qi: (b, qi, 0)),   # q rows (padded)
            pl.BlockSpec((1, L, D), lambda b, qi: (b, 0, 0)),     # k rows (full)
            pl.BlockSpec((1, L, D), lambda b, qi: (b, 0, 0)),     # v rows (full)
            pl.BlockSpec((1, tq, D), lambda b, qi: (b, qi, 0)),   # residual rows
            wfull((D, D)), wfull((1, D)),
            wfull((D, D)), wfull((1, D)),
            wfull((D, D)), wfull((1, D)),
            wfull((D, D)), wfull((1, D)),
            wfull((1, D)), wfull((1, D)),
        ],
        out_specs=pl.BlockSpec((1, tq, D), lambda b, qi: (b, qi, 0)),
        compiler_params=pltpu.CompilerParams(
            dimension_semantics=("parallel", "parallel"),
            vmem_limit_bytes=_VMEM_64MB),
    )(qk_pad, qk_in, x, x_pad,
      _bf16(p["wq"]), p["bq"], _bf16(p["wk"]), p["bk"],
      _bf16(p["wv"]), p["bv"], _bf16(p["wo"]), p["bo"],
      ln_g, ln_b)
    return out[:, :L]


# --------------------------------------------------------------------------
# Kernel 3: box-attention query projections (attn logits + box offsets)
#           one wide matmul + per-head softmax, lane-dense outputs
# --------------------------------------------------------------------------

def _box_qproj_kernel(x_ref, wa_ref, ba_ref, wb_ref, bb_ref, attn_ref, box_ref,
                      *, nhead, chunk):
    xb = _bf16(x_ref[...])                                    # (bm, D), cast once
    lg = jnp.dot(xb, wa_ref[...], preferred_element_type=jnp.float32) + ba_ref[...]
    outs = []
    for h in range(nhead):                                    # per-head softmax over chunk
        lg_h = lg[:, h * chunk:(h + 1) * chunk]
        lg_h = lg_h - jnp.max(lg_h, axis=-1, keepdims=True)
        e = jnp.exp(lg_h)
        outs.append(e * pl.reciprocal(jnp.sum(e, axis=-1, keepdims=True), approx=True))
    attn_ref[...] = jnp.concatenate(outs, axis=-1).astype(attn_ref.dtype)
    box_ref[...] = (jnp.dot(xb, wb_ref[...], preferred_element_type=jnp.float32)
                    + bb_ref[...]).astype(box_ref.dtype)


# --------------------------------------------------------------------------
# Kernel 4: per-level value proj + one-hot sampling matmuls + fused out proj
#           (+ residual + LayerNorm2)
# --------------------------------------------------------------------------

def _box_sample_kernel(*refs, nhead, nlevel, eps):
    mem_refs = refs[:nlevel]                                  # (1, S_l, D) bf16 each
    a_refs = refs[nlevel:2 * nlevel]                          # (1, nhead, L, S_l) bf16 each
    (wv_ref, bv_ref, wo_ref, bo_ref, res_ref, g_ref, beta_ref, o_ref) = refs[2 * nlevel:]

    res = res_ref[0].astype(jnp.float32)                      # (L, D)
    L, D = res.shape
    Dh = D // nhead
    head_acc = [jnp.zeros((L, Dh), jnp.float32) for _ in range(nhead)]
    for lvl in range(nlevel):                                 # static unroll over levels
        mem_l = mem_refs[lvl][0]                              # (S_l, D) bf16
        v_l = jnp.dot(mem_l, wv_ref[...],
                      preferred_element_type=jnp.float32) + bv_ref[...]   # full-D value proj
        v_l = _bf16(v_l)
        for h in range(nhead):                                # static unroll over heads
            A = a_refs[lvl][0, h]                             # (L, S_l)   bilinear*attn
            head_acc[h] = head_acc[h] + jnp.dot(
                A, v_l[:, h * Dh:(h + 1) * Dh], preferred_element_type=jnp.float32)
    sampled = _bf16(jnp.concatenate(head_acc, axis=-1))        # (L, D)
    y = jnp.dot(sampled, wo_ref[...], preferred_element_type=jnp.float32) + bo_ref[...] + res
    o_ref[0] = _layernorm(y, g_ref[...], beta_ref[...], eps).astype(o_ref.dtype)


# --------------------------------------------------------------------------
# Kernel 5: FFN (+ residual + LayerNorm3)
# --------------------------------------------------------------------------

def _ffn_ln_kernel(x_ref, w1_ref, b1_ref, w2_ref, b2_ref, g_ref, beta_ref, o_ref, *, eps):
    x = x_ref[...].astype(jnp.float32)                        # (bm, D)
    h = jnp.dot(_bf16(x), w1_ref[...], preferred_element_type=jnp.float32) + b1_ref[...]
    h = jnp.maximum(h, 0.0)
    y = jnp.dot(_bf16(h), w2_ref[...], preferred_element_type=jnp.float32) + b2_ref[...]
    y = y + x
    o_ref[...] = _layernorm(y, g_ref[...], beta_ref[...], eps).astype(o_ref.dtype)


def ffn_ln_block(x, w1, b1, w2, b2, ln_g, ln_b, eps=1e-5):
    B, L, D = x.shape
    F = w1.shape[1]
    M = B * L
    x2 = x.reshape(M, D)
    bm, Mp = _row_block(M)
    if Mp != M:
        x2 = jnp.pad(x2, ((0, Mp - M), (0, 0)))
    out = pl.pallas_call(
        functools.partial(_ffn_ln_kernel, eps=eps),
        out_shape=jax.ShapeDtypeStruct((Mp, D), x.dtype),
        grid=(Mp // bm,),
        in_specs=[
            pl.BlockSpec((bm, D), lambda i: (i, 0)),
            pl.BlockSpec((D, F), lambda i: (0, 0)),
            pl.BlockSpec((1, F), lambda i: (0, 0)),
            pl.BlockSpec((F, D), lambda i: (0, 0)),
            pl.BlockSpec((1, D), lambda i: (0, 0)),
            pl.BlockSpec((1, D), lambda i: (0, 0)),
            pl.BlockSpec((1, D), lambda i: (0, 0)),
        ],
        out_specs=pl.BlockSpec((bm, D), lambda i: (i, 0)),
        compiler_params=pltpu.CompilerParams(dimension_semantics=("parallel",)),
    )(x2, _bf16(w1), b1, _bf16(w2), b2, ln_g, ln_b)
    return out[:M].reshape(B, L, D)


# --------------------------------------------------------------------------
# Box3dAttention: plain-JAX geometry (no gathers) + the two Pallas kernels above
# --------------------------------------------------------------------------

def _kernel_indices(kernel_size):
    if kernel_size % 2 == 0:
        start = -kernel_size // 2 + 0.5
        end = kernel_size // 2 - 0.5
    else:
        start = -(kernel_size - 1) // 2
        end = (kernel_size - 1) // 2
    idx = np.linspace(start, end, kernel_size)
    ii, jj = np.meshgrid(idx, idx, indexing="ij")
    return jnp.asarray(np.stack([jj, ii], axis=-1).reshape(-1, 2) / kernel_size,
                       jnp.float32)                           # (P, 2) as (x, y)


def _box_sampling_grid(box_off, ref_windows, nhead, nlevel, kernel_size):
    """Rotated per-box sampling locations in normalized [0,1] coords."""
    B, L, _ = box_off.shape
    off = box_off.reshape(B, L, nhead, nlevel, 5)
    ref = ref_windows[:, :, None, None, :]                    # (B, L, 1, 1, 7)
    ref_xy = ref[..., 0:2]
    ref_wh = ref[..., 3:5]
    ref_angles = ref[..., 6:7]
    ref_boxes = jnp.concatenate([ref_xy, ref_wh], axis=-1)
    off_b, off_a = off[..., :4], off[..., 4:5]
    angles = (ref_angles + off_a / 16.0) * (2.0 * math.pi)    # with_rotation=True
    boxes = ref_boxes + off_b / 8.0 * jnp.concatenate([ref_wh, ref_wh], axis=-1)
    center = boxes[..., None, :2]
    size = boxes[..., None, 2:]
    cos_a, sin_a = jnp.cos(angles), jnp.sin(angles)
    rot = jnp.stack([cos_a, -sin_a, sin_a, cos_a], axis=-1).reshape(
        B, L, nhead, nlevel, 1, 2, 2)
    kidx = _kernel_indices(kernel_size)                       # (P, 2)
    grid = kidx * jnp.maximum(size, 0.0)                      # (B, L, H, nlevel, P, 2)
    grid = center + jnp.sum(grid[..., None, :] * rot, axis=-1)
    return grid


def _build_sampling_matrices(grid_xy, attn, v_shapes):
    """Fold bilinear weights (zero-padded, align_corners=False) and the attention
    weights into one dense per-level matrix A_l of shape (B, H, L, Hl*Wl), so the
    deformable sampling becomes an MXU matmul A_l @ V_l inside the Pallas kernel.
    Built with vectorized compares only (no gather / scatter)."""
    B, L, H, nlevel, P, _ = grid_xy.shape
    mats = []
    for lvl, (Hl, Wl) in enumerate(v_shapes):
        loc = grid_xy[:, :, :, lvl]                           # (B, L, H, P, 2)
        a = attn[:, :, :, lvl]                                # (B, L, H, P)
        x = loc[..., 0] * Wl - 0.5
        y = loc[..., 1] * Hl - 0.5
        x0 = jnp.floor(x)
        y0 = jnp.floor(y)
        S = Hl * Wl
        iota = jnp.arange(S, dtype=jnp.int32)
        acc = jnp.zeros((B, L, H, S), jnp.float32)
        for dy, dx in ((0, 0), (0, 1), (1, 0), (1, 1)):
            xc = x0 + dx
            yc = y0 + dy
            wgt = (1.0 - jnp.abs(x - xc)) * (1.0 - jnp.abs(y - yc))
            valid = (xc >= 0) & (xc <= Wl - 1) & (yc >= 0) & (yc <= Hl - 1)
            xi = jnp.clip(xc, 0, Wl - 1).astype(jnp.int32)
            yi = jnp.clip(yc, 0, Hl - 1).astype(jnp.int32)
            flat = yi * Wl + xi                               # (B, L, H, P)
            w_eff = wgt * valid.astype(jnp.float32) * a       # bilinear * valid * attn
            onehot = (flat[..., None] == iota).astype(jnp.float32)   # (B, L, H, P, S)
            acc = acc + jnp.sum(w_eff[..., None] * onehot, axis=3)
        mats.append(jnp.transpose(acc, (0, 2, 1, 3)))         # (B, H, L, S)
    return mats


def box3d_attention_block(box_q, residual, memory, v_shapes, v_start_idx, ref_windows,
                          p, ln_g, ln_b, nhead, nlevel, kernel_size=5, eps=1e-5):
    B, L, D = box_q.shape
    P = kernel_size * kernel_size
    chunk = nlevel * P
    nbox = nhead * nlevel * 5

    # ---- fused attn-logit + box-offset projections with per-head softmax -------
    M = B * L
    x2 = box_q.reshape(M, D)
    bm, Mp = _row_block(M)
    if Mp != M:
        x2 = jnp.pad(x2, ((0, Mp - M), (0, 0)))
    attn_out, box_out = pl.pallas_call(
        functools.partial(_box_qproj_kernel, nhead=nhead, chunk=chunk),
        out_shape=(jax.ShapeDtypeStruct((Mp, nhead * chunk), jnp.float32),
                   jax.ShapeDtypeStruct((Mp, nbox), jnp.float32)),
        grid=(Mp // bm,),
        in_specs=[
            pl.BlockSpec((bm, D), lambda i: (i, 0)),
            pl.BlockSpec((D, nhead * chunk), lambda i: (0, 0)),
            pl.BlockSpec((1, nhead * chunk), lambda i: (0, 0)),
            pl.BlockSpec((D, nbox), lambda i: (0, 0)),
            pl.BlockSpec((1, nbox), lambda i: (0, 0)),
        ],
        out_specs=(pl.BlockSpec((bm, nhead * chunk), lambda i: (i, 0)),
                   pl.BlockSpec((bm, nbox), lambda i: (i, 0))),
        compiler_params=pltpu.CompilerParams(dimension_semantics=("parallel",)),
    )(x2, _bf16(p["w_attn"]), p["b_attn"], _bf16(p["w_box"]), p["b_box"])

    # lane-dense layout -> contiguous view reshapes, no transpose copy
    attn = attn_out[:M].reshape(B, L, nhead, nlevel, P)
    box_off = box_out[:M].reshape(B, L, nbox)

    # ---- sampling geometry + bilinear->one-hot matrices (vectorized, no gather) --
    # TODO(synk): replace with scalar-prefetch tap-index gather at real BEV sizes.
    grid_xy = _box_sampling_grid(box_off, ref_windows, nhead, nlevel, kernel_size)
    mats = [_bf16(m) for m in _build_sampling_matrices(grid_xy, attn, v_shapes)]

    # per-level memory slabs (bf16), passed as separate full-block inputs
    mem_levels = []
    for lvl in range(nlevel):
        start = int(v_start_idx[lvl])
        size = int(v_shapes[lvl][0] * v_shapes[lvl][1])
        mem_levels.append(_bf16(memory[:, start:start + size, :]))

    # ---- value proj + sampling matmuls + out proj + residual + LayerNorm2 -------
    in_specs = []
    for lvl in range(nlevel):
        S = mem_levels[lvl].shape[1]
        in_specs.append(pl.BlockSpec((1, S, D), lambda b: (b, 0, 0)))
    for lvl in range(nlevel):
        S = mats[lvl].shape[-1]
        in_specs.append(pl.BlockSpec((1, nhead, L, S), lambda b: (b, 0, 0, 0)))
    in_specs += [
        pl.BlockSpec((D, D), lambda b: (0, 0)),
        pl.BlockSpec((1, D), lambda b: (0, 0)),
        pl.BlockSpec((D, D), lambda b: (0, 0)),
        pl.BlockSpec((1, D), lambda b: (0, 0)),
        pl.BlockSpec((1, L, D), lambda b: (b, 0, 0)),
        pl.BlockSpec((1, D), lambda b: (0, 0)),
        pl.BlockSpec((1, D), lambda b: (0, 0)),
    ]
    return pl.pallas_call(
        functools.partial(_box_sample_kernel, nhead=nhead, nlevel=nlevel, eps=eps),
        out_shape=jax.ShapeDtypeStruct((B, L, D), residual.dtype),
        grid=(B,),
        in_specs=in_specs,
        out_specs=pl.BlockSpec((1, L, D), lambda b: (b, 0, 0)),
        compiler_params=pltpu.CompilerParams(
            dimension_semantics=("parallel",),
            vmem_limit_bytes=_VMEM_64MB),
    )(*mem_levels, *mats,
      _bf16(p["w_value"]), p["b_value"], _bf16(p["w_out"]), p["b_out"],
      residual, ln_g, ln_b)


# --------------------------------------------------------------------------
# Full decoder layer forward (dropout = identity / eval mode)
# --------------------------------------------------------------------------

def transformer_decoder_layer(idx, query, query_pos, memory, memory_shape,
                              memory_start_idx, ref_windows, params, nhead, nlevel):
    if idx == 0:
        query = mlp_pos_embed(ref_windows, params["pos_mlp"])
        qk_in = query
        pos = None                                            # query_pos stays None
    elif query_pos is None:
        query_pos = mlp_pos_embed(ref_windows, params["pos_mlp"])
        pos = query_pos
        qk_in = query + query_pos
    else:
        raise ValueError("matches the PyTorch module: q/k undefined in this branch")

    # self attention (+ residual + norm1), v = query (no pos embed on values)
    query = self_attn_block(qk_in, query, params["self_attn"],
                            params["ln1_g"], params["ln1_b"], nhead)

    # box (deformable) cross attention over multi-level BEV memory (+ residual + norm2)
    box_q = query if pos is None else query + pos
    query = box3d_attention_block(box_q, query, memory, memory_shape, memory_start_idx,
                                  ref_windows[..., :7], params["box_attn"],
                                  params["ln2_g"], params["ln2_b"], nhead, nlevel)

    # FFN (linear1 -> relu -> linear2) + residual + norm3
    query = ffn_ln_block(query, params["w_ff1"], params["b_ff1"],
                         params["w_ff2"], params["b_ff2"],
                         params["ln3_g"], params["ln3_b"])
    return query


# --------------------------------------------------------------------------
# Deterministic parameter init (head-fused weight layouts for the fused kernels)
# --------------------------------------------------------------------------

def init_params(key, d_model, nhead, nlevel, dim_feedforward, kernel_size=5):
    P = kernel_size ** 2
    chunk = nlevel * P
    nbox = nhead * nlevel * 5
    keys = iter(jax.random.split(key, 16))

    def w(shape, scale=0.02):
        return scale * jax.random.normal(next(keys), shape, dtype=jnp.float32)

    z = lambda *s: jnp.zeros(s, jnp.float32)
    o = lambda *s: jnp.ones(s, jnp.float32)

    return {
        "pos_mlp": {
            "w1": w((10, d_model)), "b1": z(1, d_model),
            "w2": w((d_model, d_model)), "b2": z(1, d_model),
            "w3": w((d_model, d_model)), "b3": z(1, d_model),
        },
        "self_attn": {
            "wq": w((d_model, d_model)), "bq": z(1, d_model),
            "wk": w((d_model, d_model)), "bk": z(1, d_model),
            "wv": w((d_model, d_model)), "bv": z(1, d_model),
            "wo": w((d_model, d_model)), "bo": z(1, d_model),
        },
        "box_attn": {
            "w_value": w((d_model, d_model)), "b_value": z(1, d_model),
            "w_attn": w((d_model, nhead * chunk)), "b_attn": z(1, nhead * chunk),
            "w_box": w((d_model, nbox)), "b_box": z(1, nbox),
            "w_out": w((d_model, d_model)), "b_out": z(1, d_model),
        },
        "w_ff1": w((d_model, dim_feedforward)), "b_ff1": z(1, dim_feedforward),
        "w_ff2": w((dim_feedforward, d_model)), "b_ff2": z(1, d_model),
        "ln1_g": o(1, d_model), "ln1_b": z(1, d_model),
        "ln2_g": o(1, d_model), "ln2_b": z(1, d_model),
        "ln3_g": o(1, d_model), "ln3_b": z(1, d_model),
    }


if __name__ == "__main__":
    d_model, nhead, nlevel, dim_ff = 32, 4, 2, 64
    B, L = 2, 8
    level_shapes = [(16, 16), (8, 8)]                # multi-level BEV map shapes
    start_idx = [0]
    for (h, w_) in level_shapes[:-1]:
        start_idx.append(start_idx[-1] + h * w_)
    LV = sum(h * w_ for h, w_ in level_shapes)       # 320

    key = jax.random.PRNGKey(0)
    kp, k1, k2 = jax.random.split(key, 3)
    params = init_params(kp, d_model, nhead, nlevel, dim_ff)
    ref_windows = jax.random.uniform(k1, (B, L, 10), jnp.float32, 0.1, 0.9)
    memory = jax.random.normal(k2, (B, LV, d_model), dtype=jnp.float32)

    out = transformer_decoder_layer(
        idx=0, query=None, query_pos=None, memory=memory,
        memory_shape=level_shapes, memory_start_idx=start_idx,
        ref_windows=ref_windows, params=params, nhead=nhead, nlevel=nlevel)
    out = jax.block_until_ready(out)

    assert out.shape == (B, L, d_model)
    assert bool(jnp.all(jnp.isfinite(out)))
    print("KERNEL_OK")
</pallas_src>

<mosaic_0001>
module attributes {stable_mosaic.version = 11 : i64} {
  func.func @_pos_mlp_kernel(%arg0: i32, %arg1: memref<16x10xf32, #tpu.memory_space<vmem>>, %arg2: memref<10x32xf32, #tpu.memory_space<vmem>>, %arg3: memref<1x32xf32, #tpu.memory_space<vmem>>, %arg4: memref<32x32xbf16, #tpu.memory_space<vmem>>, %arg5: memref<1x32xf32, #tpu.memory_space<vmem>>, %arg6: memref<32x32xbf16, #tpu.memory_space<vmem>>, %arg7: memref<1x32xf32, #tpu.memory_space<vmem>>, %arg8: memref<16x32xf32, #tpu.memory_space<vmem>>) attributes {dimension_semantics = [#tpu.dimension_semantics<parallel>], iteration_bounds = array<i64: 1>, scalar_prefetch = 0 : i64, scratch_operands = 0 : i64, tpu.core_type = #tpu.core_type<tc>, window_params = [{transform_indices = @transform_0, window_bounds = array<i64: 16, 10>}, {pipeline_mode = #tpu.pipeline_mode<synchronous>, transform_indices = @transform_1, window_bounds = array<i64: 10, 32>}, {pipeline_mode = #tpu.pipeline_mode<synchronous>, transform_indices = @transform_2, window_bounds = array<i64: 1, 32>}, {pipeline_mode = #tpu.pipeline_mode<synchronous>, transform_indices = @transform_3, window_bounds = array<i64: 32, 32>}, {pipeline_mode = #tpu.pipeline_mode<synchronous>, transform_indices = @transform_4, window_bounds = array<i64: 1, 32>}, {pipeline_mode = #tpu.pipeline_mode<synchronous>, transform_indices = @transform_5, window_bounds = array<i64: 32, 32>}, {pipeline_mode = #tpu.pipeline_mode<synchronous>, transform_indices = @transform_6, window_bounds = array<i64: 1, 32>}, {transform_indices = @transform_7, window_bounds = array<i64: 16, 32>}]} {
    %c0 = arith.constant 0 : index
    %c0_0 = arith.constant 0 : index
    %0 = vector.load %arg1[%c0, %c0_0] : memref<16x10xf32, #tpu.memory_space<vmem>>, vector<16x10xf32>
    %c0_1 = arith.constant 0 : index
    %c0_2 = arith.constant 0 : index
    %1 = vector.load %arg2[%c0_1, %c0_2] : memref<10x32xf32, #tpu.memory_space<vmem>>, vector<10x32xf32>
    %cst = arith.constant dense<0.000000e+00> : vector<16x32xf32>
    %2 = tpu.matmul %0, %1, %cst {dimension_numbers = #tpu.dot_dimension_numbers<[1], [0], [0], [1], [0, 0, 1, 1], [], []>} : vector<16x10xf32>, vector<10x32xf32>, vector<16x32xf32> -> vector<16x32xf32>
    %c0_3 = arith.constant 0 : index
    %c0_4 = arith.constant 0 : index
    %3 = vector.load %arg3[%c0_3, %c0_4] : memref<1x32xf32, #tpu.memory_space<vmem>>, vector<1x32xf32>
    %4 = vector.broadcast %3 : vector<1x32xf32> to vector<16x32xf32>
    %5 = arith.addf %2, %4 : vector<16x32xf32>
    %cst_5 = arith.constant 0.000000e+00 : f32
    %6 = vector.broadcast %cst_5 : f32 to vector<16x32xf32>
    %7 = arith.maximumf %5, %6 : vector<16x32xf32>
    %8 = arith.truncf %7 : vector<16x32xf32> to vector<16x32xbf16>
    %c0_6 = arith.constant 0 : index
    %c0_7 = arith.constant 0 : index
    %9 = vector.load %arg4[%c0_6, %c0_7] : memref<32x32xbf16, #tpu.memory_space<vmem>>, vector<32x32xbf16>
    %cst_8 = arith.constant dense<0.000000e+00> : vector<16x32xf32>
    %10 = tpu.matmul %8, %9, %cst_8 {dimension_numbers = #tpu.dot_dimension_numbers<[1], [0], [0], [1], [0, 0, 1, 1], [], []>} : vector<16x32xbf16>, vector<32x32xbf16>, vector<16x32xf32> -> vector<16x32xf32>
    %c0_9 = arith.constant 0 : index
    %c0_10 = arith.constant 0 : index
    %11 = vector.load %arg5[%c0_9, %c0_10] : memref<1x32xf32, #tpu.memory_space<vmem>>, vector<1x32xf32>
    %12 = vector.broadcast %11 : vector<1x32xf32> to vector<16x32xf32>
    %13 = arith.addf %10, %12 : vector<16x32xf32>
    %cst_11 = arith.constant 0.000000e+00 : f32
    %14 = vector.broadcast %cst_11 : f32 to vector<16x32xf32>
    %15 = arith.maximumf %13, %14 : vector<16x32xf32>
    %16 = arith.truncf %15 : vector<16x32xf32> to vector<16x32xbf16>
    %c0_12 = arith.constant 0 : index
    %c0_13 = arith.constant 0 : index
    %17 = vector.load %arg6[%c0_12, %c0_13] : memref<32x32xbf16, #tpu.memory_space<vmem>>, vector<32x32xbf16>
    %cst_14 = arith.constant dense<0.000000e+00> : vector<16x32xf32>
    %18 = tpu.matmul %16, %17, %cst_14 {dimension_numbers = #tpu.dot_dimension_numbers<[1], [0], [0], [1], [0, 0, 1, 1], [], []>} : vector<16x32xbf16>, vector<32x32xbf16>, vector<16x32xf32> -> vector<16x32xf32>
    %c0_15 = arith.constant 0 : index
    %c0_16 = arith.constant 0 : index
    %19 = vector.load %arg7[%c0_15, %c0_16] : memref<1x32xf32, #tpu.memory_space<vmem>>, vector<1x32xf32>
    %20 = vector.broadcast %19 : vector<1x32xf32> to vector<16x32xf32>
    %21 = arith.addf %18, %20 : vector<16x32xf32>
    %c0_17 = arith.constant 0 : index
    %c0_18 = arith.constant 0 : index
    %22 = vector.load %arg8[%c0_17, %c0_18] : memref<16x32xf32, #tpu.memory_space<vmem>>, vector<16x32xf32>
    tpu.vector_store %arg8[%c0_17, %c0_18], %21 {strides = array<i32>} : memref<16x32xf32, #tpu.memory_space<vmem>>, vector<16x32xf32>,
    return
  }
  func.func @transform_0(%arg0: i32) -> (i32, i32) {
    %c0_i32 = arith.constant 0 : i32
    %c0_i32_0 = arith.constant 0 : i32
    return %arg0, %c0_i32 : i32, i32
  }
  func.func @transform_1(%arg0: i32) -> (i32, i32) {
    %c0_i32 = arith.constant 0 : i32
    %c0_i32_0 = arith.constant 0 : i32
    %c0_i32_1 = arith.constant 0 : i32
    return %c0_i32, %c0_i32_0 : i32, i32
  }
  func.func @transform_2(%arg0: i32) -> (i32, i32) {
    %c0_i32 = arith.constant 0 : i32
    %c0_i32_0 = arith.constant 0 : i32
    %c0_i32_1 = arith.constant 0 : i32
    return %c0_i32, %c0_i32_0 : i32, i32
  }
  func.func @transform_3(%arg0: i32) -> (i32, i32) {
    %c0_i32 = arith.constant 0 : i32
    %c0_i32_0 = arith.constant 0 : i32
    %c0_i32_1 = arith.constant 0 : i32
    return %c0_i32, %c0_i32_0 : i32, i32
  }
  func.func @transform_4(%arg0: i32) -> (i32, i32) {
    %c0_i32 = arith.constant 0 : i32
    %c0_i32_0 = arith.constant 0 : i32
    %c0_i32_1 = arith.constant 0 : i32
    return %c0_i32, %c0_i32_0 : i32, i32
  }
  func.func @transform_5(%arg0: i32) -> (i32, i32) {
    %c0_i32 = arith.constant 0 : i32
    %c0_i32_0 = arith.constant 0 : i32
    %c0_i32_1 = arith.constant 0 : i32
    return %c0_i32, %c0_i32_0 : i32, i32
  }
  func.func @transform_6(%arg0: i32) -> (i32, i32) {
    %c0_i32 = arith.constant 0 : i32
    %c0_i32_0 = arith.constant 0 : i32
    %c0_i32_1 = arith.constant 0 : i32
    return %c0_i32, %c0_i32_0 : i32, i32
  }
  func.func @transform_7(%arg0: i32) -> (i32, i32) {
    %c0_i32 = arith.constant 0 : i32
    %c0_i32_0 = arith.constant 0 : i32
    return %arg0, %c0_i32 : i32, i32
  }
}

</mosaic_0001>

<llo_original>
// kernel: tpu_custom_call.1
$region0: #{tpu_custom_call.1}
  #allocation0 [shape = 'u32[]', space=smem, size = 0x4, offset = 0x4, fixed_abs, tag = 'smem constant byte address 0x4 - core index']
  #allocation1 [shape = 'u32[144,128]{1,0:T(1,128)}', space=vmem, size = 0x12000, scoped, tag = 'internal scratch']
  %s0 = inlined_call_operand.hbm [shape: f32[16,10], index: 0, kind: input, shape index: {}]
  %s1 = inlined_call_operand.hbm [shape: f32[10,32], index: 1, kind: input, shape index: {}]
  %s2 = inlined_call_operand.vmem [shape: f32[1,32], index: 2, kind: input, shape index: {}]
  %s3 = inlined_call_operand.hbm [shape: bf16[32,32], index: 3, kind: input, shape index: {}]
  %s4 = inlined_call_operand.vmem [shape: f32[1,32], index: 4, kind: input, shape index: {}]
  %s5 = inlined_call_operand.hbm [shape: bf16[32,32], index: 5, kind: input, shape index: {}]
  %s6 = inlined_call_operand.vmem [shape: f32[1,32], index: 6, kind: input, shape index: {}]
  %s7 = inlined_call_operand.hbm [shape: f32[16,32], index: 7, kind: output, shape index: {}]
  %s8 = sld [smem:[#allocation0]]
  $region54: #{tpu_custom_call.1} parent=0
    _
  %s10 = ssub.s32 1, %s8
  %s11 = scalar_select 0, %s10, %s8
  $region1: #{tpu_custom_call.1} parent=0
    #allocation2 [shape = 'u8[8192]{0}', space=vmem, size = 0x2000, scoped, tag = 'input window, operand 0, single buffered']
    #allocation3 [shape = 's32[1]{0}', space=sflag, size = 0x4, scoped, tag = 'scoped memory for tpu_custom_call.1']
    #allocation4 [shape = 's32[1]{0}', space=sflag, size = 0x4, scoped, tag = 'scoped memory for tpu_custom_call.1']
    #allocation5 [shape = 'u8[8192]{0}', space=vmem, size = 0x2000, scoped, tag = 'input window, operand 1, single buffered']
    #allocation6 [shape = 's32[1]{0}', space=sflag, size = 0x4, scoped, tag = 'scoped memory for tpu_custom_call.1']
    #allocation7 [shape = 'u8[8192]{0}', space=vmem, size = 0x2000, scoped, tag = 'input window, operand 3, single buffered']
    #allocation8 [shape = 'u8[8192]{0}', space=vmem, size = 0x2000, scoped, tag = 'input window, operand 5, single buffered']
    #allocation9 [shape = 's32[1]{0}', space=sflag, size = 0x4, scoped, tag = 'scoped memory for tpu_custom_call.1']
    #allocation10 [shape = 'u8[8192]{0}', space=vmem, size = 0x2000, scoped, tag = 'output window, operand 0, single buffered']
    %12 = vsyncpa [#allocation3], 0
    %13 = vsyncpa [#allocation6], 0
    %14 = vsyncpa [#allocation9], 0
    %15 = vsyncpa [#allocation4], 0
    // Predicated region
    $region2: #{tpu_custom_call.1} parent=1 // pred_check
      _
    $region3: #{tpu_custom_call.1} parent=1 // pred_check_branch
      %17 = sbr.rel (0) target = $region5
    $region4: #{tpu_custom_call.1} parent=1 // pred_region
      %s19 = ssub.s32 256, 256
      %20 = vsyncadd [#allocation3], %s19
      %s21 = sshll.u32 [#allocation2], 4
      %s22 = int_to_ptr.vmem [resolvable:$true] %s21
      %27 = dma.hbm_to_vmem [thread:$0]  %s0, 256, %s22, [#allocation3], 128, 128, 8
    $region5: #{tpu_custom_call.1} parent=1 // pred_fallthru
      _
    // Predicated region
    $region6: #{tpu_custom_call.1} parent=1 // pred_check
      _
    $region7: #{tpu_custom_call.1} parent=1 // pred_check_branch
      %29 = sbr.rel (0) target = $region9
    $region8: #{tpu_custom_call.1} parent=1 // pred_region
      %s31 = ssub.s32 256, 256
      %32 = vsyncadd [#allocation6], %s31
      %s33 = sshll.u32 [#allocation5], 4
      %s34 = int_to_ptr.vmem [resolvable:$true] %s33
      %39 = dma.hbm_to_vmem [thread:$0]  %s1, 256, %s34, [#allocation6], 128, 128, 8
    $region9: #{tpu_custom_call.1} parent=1 // pred_fallthru
      _
    // Predicated region
    $region10: #{tpu_custom_call.1} parent=1 // pred_check
      _
    $region11: #{tpu_custom_call.1} parent=1 // pred_check_branch
      %41 = sbr.rel (0) target = $region13
    $region12: #{tpu_custom_call.1} parent=1 // pred_region
      _
    $region13: #{tpu_custom_call.1} parent=1 // pred_fallthru
      _
    // Predicated region
    $region14: #{tpu_custom_call.1} parent=1 // pred_check
      _
    $region15: #{tpu_custom_call.1} parent=1 // pred_check_branch
      %43 = sbr.rel (0) target = $region17
    $region16: #{tpu_custom_call.1} parent=1 // pred_region
      %s45 = ssub.s32 256, 256
      %46 = vsyncadd [#allocation6], %s45
      %s47 = sshll.u32 [#allocation7], 4
      %s48 = int_to_ptr.vmem [resolvable:$true] %s47
      %53 = dma.hbm_to_vmem [thread:$0]  %s3, 256, %s48, [#allocation6], 64, 64, 4
    $region17: #{tpu_custom_call.1} parent=1 // pred_fallthru
      _
    // Predicated region
    $region18: #{tpu_custom_call.1} parent=1 // pred_check
      _
    $region19: #{tpu_custom_call.1} parent=1 // pred_check_branch
      %55 = sbr.rel (0) target = $region21
    $region20: #{tpu_custom_call.1} parent=1 // pred_region
      _
    $region21: #{tpu_custom_call.1} parent=1 // pred_fallthru
      _
    // Predicated region
    $region22: #{tpu_custom_call.1} parent=1 // pred_check
      _
    $region23: #{tpu_custom_call.1} parent=1 // pred_check_branch
      %57 = sbr.rel (0) target = $region25
    $region24: #{tpu_custom_call.1} parent=1 // pred_region
      %s59 = ssub.s32 256, 256
      %60 = vsyncadd [#allocation9], %s59
      %s61 = sshll.u32 [#allocation8], 4
      %s62 = int_to_ptr.vmem [resolvable:$true] %s61
      %67 = dma.hbm_to_vmem [thread:$0]  %s5, 256, %s62, [#allocation9], 64, 64, 4
    $region25: #{tpu_custom_call.1} parent=1 // pred_fallthru
      _
    // Predicated region
    $region26: #{tpu_custom_call.1} parent=1 // pred_check
      _
    $region27: #{tpu_custom_call.1} parent=1 // pred_check_branch
      %69 = sbr.rel (0) target = $region29
    $region28: #{tpu_custom_call.1} parent=1 // pred_region
      _
    $region29: #{tpu_custom_call.1} parent=1 // pred_fallthru
      _
    // Predicated region
    $region30: #{tpu_custom_call.1} parent=1 // pred_check
      _
    $region31: #{tpu_custom_call.1} parent=1 // pred_check_branch
      %71 = sbr.rel (0) target = $region33
    $region32: #{tpu_custom_call.1} parent=1 // pred_region
      %72 = dma.done [#allocation3], 256
    $region33: #{tpu_custom_call.1} parent=1 // pred_fallthru
      _
    // Predicated region
    $region34: #{tpu_custom_call.1} parent=1 // pred_check
      _
    $region35: #{tpu_custom_call.1} parent=1 // pred_check_branch
      %74 = sbr.rel (0) target = $region37
    $region36: #{tpu_custom_call.1} parent=1 // pred_region
      %75 = dma.done [#allocation6], 256
    $region37: #{tpu_custom_call.1} parent=1 // pred_fallthru
      _
    // Predicated region
    $region38: #{tpu_custom_call.1} parent=1 // pred_check
      _
    $region39: #{tpu_custom_call.1} parent=1 // pred_check_branch
      %77 = sbr.rel (0) target = $region41
    $region40: #{tpu_custom_call.1} parent=1 // pred_region
      %78 = dma.done [#allocation6], 256
    $region41: #{tpu_custom_call.1} parent=1 // pred_fallthru
      _
    // Predicated region
    $region42: #{tpu_custom_call.1} parent=1 // pred_check
      _
    $region43: #{tpu_custom_call.1} parent=1 // pred_check_branch
      %80 = sbr.rel (0) target = $region45
    $region44: #{tpu_custom_call.1} parent=1 // pred_region
      %81 = dma.done [#allocation9], 256
    $region45: #{tpu_custom_call.1} parent=1 // pred_fallthru
      _
    %v83 = vld [vmem:[#allocation2] sm:$0xff]
    %v84 = vld [vmem:[#allocation2 + $0x8] sm:$0xff]
    %v85 = vld [vmem:[#allocation5] sm:$0xff]
    %v86 = vld [vmem:[#allocation5 + $0x8] sm:$0x3]
    %v87 = vld [vmem:[%s2] sm:$0x1]
    %v89 = vlaneseq
    %v90 = vshrl.u32 %v89, 7
    %v91 = vsub.s32 0, %v90
    %v92 = vrot.slane %v87, %v91
    %vm94 = vcmask 80896
    %v96 = vsel %vm94, %v83, 0
    %v99 = vsel %vm94, %v84, 0
    %vm101 = vcmask 1041408
    %v103 = vsel %vm101, %v86, 0
    %105 = vmatprep.subr.mxu0 0.0
    %106 = vmatpush1.msra.mxu0 0.0
    %107 = vmatprep.subr.mxu0 0.0
    %108 = vmatpush1.msra.mxu0 0.0
    %109 = vmatprep.subr.mxu0 0.0
    %110 = vmatpush1.msra.mxu0 0.0
    %111 = vmatprep.subr.mxu0 0.0
    %112 = vmatpush1.msra.mxu0 0.0
    %113 = vmatprep.subr.mxu0 0.0
    %114 = vmatpush1.msra.mxu0 0.0
    %115 = vmatprep.subr.mxu0 0.0
    %116 = vmatpush1.msra.mxu0 0.0
    %117 = vmatprep.subr.mxu0 0.0
    %118 = vmatpush1.msra.mxu0 0.0
    %119 = vmatprep.subr.mxu0 0.0
    %120 = vmatpush1.msra.mxu0 0.0
    %121 = vmatprep.subr.mxu0 0.0
    %122 = vmatpush1.msra.mxu0 0.0
    %123 = vmatprep.subr.mxu0 0.0
    %124 = vmatpush1.msra.mxu0 0.0
    %125 = vmatprep.subr.mxu0 0.0
    %126 = vmatpush1.msra.mxu0 0.0
    %127 = vmatprep.subr.mxu0 0.0
    %128 = vmatpush1.msra.mxu0 0.0
    %129 = vmatprep.subr.mxu0 0.0
    %130 = vmatpush1.msra.mxu0 0.0
    %131 = vmatprep.subr.mxu0 0.0
    %132 = vmatpush1.msra.mxu0 0.0
    %133 = vmatprep.subr.mxu0 0.0
    %134 = vmatpush1.msra.mxu0 %v103
    %135 = vmatprep.subr.mxu0 0.0
    %136 = vmatpush1.msra.mxu0 %v85
    %137 = vmatprep.subr.mxu0 0.0
    %138 = vmatpush2.msra.mxu0 0.0
    %139 = vmatprep.subr.mxu0 0.0
    %140 = vmatpush2.msra.mxu0 0.0
    %141 = vmatprep.subr.mxu0 0.0
    %142 = vmatpush2.msra.mxu0 0.0
    %143 = vmatprep.subr.mxu0 0.0
    %144 = vmatpush2.msra.mxu0 0.0
    %145 = vmatprep.subr.mxu0 0.0
    %146 = vmatpush2.msra.mxu0 0.0
    %147 = vmatprep.subr.mxu0 0.0
    %148 = vmatpush2.msra.mxu0 0.0
    %149 = vmatprep.subr.mxu0 0.0
    %150 = vmatpush2.msra.mxu0 0.0
    %151 = vmatprep.subr.mxu0 0.0
    %152 = vmatpush2.msra.mxu0 0.0
    %153 = vmatprep.subr.mxu0 0.0
    %154 = vmatpush2.msra.mxu0 0.0
    %155 = vmatprep.subr.mxu0 0.0
    %156 = vmatpush2.msra.mxu0 0.0
    %157 = vmatprep.subr.mxu0 0.0
    %158 = vmatpush2.msra.mxu0 0.0
    %159 = vmatprep.subr.mxu0 0.0
    %160 = vmatpush2.msra.mxu0 0.0
    %161 = vmatprep.subr.mxu0 0.0
    %162 = vmatpush2.msra.mxu0 0.0
    %163 = vmatprep.subr.mxu0 0.0
    %164 = vmatpush2.msra.mxu0 0.0
    %165 = vmatprep.subr.mxu0 0.0
    %166 = vmatpush2.msra.mxu0 0.0
    %167 = vmatprep.subr.mxu0 0.0
    %168 = vmatpush2.msra.mxu0 0.0
    %169 = vmatprep.mubr.f32.mxu0 0.0
    %170 = vmatmul.mubr.f32.gmra.mxu0 %v96
    %v171 = vpop.f32.mrf.mxu0
    %v172 = vadd.f32 %v92, %v171
    %v173 = vpop.f32.mrf.mxu0
    %174 = vmatprep.mubr.f32.mxu0 0.0
    %175 = vmatmul.mubr.f32.gmra.mxu0 %v99
    %v176 = vpop.f32.mrf.mxu0
    %v177 = vadd.f32 %v92, %v176
    %v178 = vpop.f32.mrf.mxu0
    %179 = vdwg.mxu0
    %v180 = vmax.f32 %v172, 0.0
    %v181 = vmax.f32 %v177, 0.0
    %v182 = vpack.c.bf16 %v181, %v180
    %v183 = vld [vmem:[#allocation7] sm:$0xf]
    %v184 = vld [vmem:[#allocation7 + $0x4] sm:$0xf]
    %v185 = vld [vmem:[#allocation7 + $0x8] sm:$0xf]
    %v186 = vld [vmem:[#allocation7 + $0xc] sm:$0xf]
    %v187 = vld [vmem:[%s4] sm:$0x1]
    %v189 = vlaneseq
    %v190 = vshrl.u32 %v189, 7
    %v191 = vsub.s32 0, %v190
    %v192 = vrot.slane %v187, %v191
    %v198 = vunpack.c.l.b16 %v183
    %v199 = vunpack.c.l.b16 %v184
    %v200 = vunpack.c.l.b16 %v185
    %v201 = vunpack.c.l.b16 %v186
    %v202 = vpack.c.b16 %v199, %v198
    %v203 = vpack.c.b16 %v201, %v200
    %vm206 = vcmask 261120
    %v208 = vsel %vm206, %v182, 0
    %210 = vmatprep.subr.bf16.mxu0 0
    %211 = vmatpush1.bf16.msra.mxu0 0
    %212 = vmatprep.subr.bf16.mxu0 0
    %213 = vmatpush1.bf16.msra.mxu0 0
    %214 = vmatprep.subr.bf16.mxu0 0
    %215 = vmatpush1.bf16.msra.mxu0 0
    %216 = vmatprep.subr.bf16.mxu0 0
    %217 = vmatpush1.bf16.msra.mxu0 0
    %218 = vmatprep.subr.bf16.mxu0 0
    %219 = vmatpush1.bf16.msra.mxu0 0
    %220 = vmatprep.subr.bf16.mxu0 0
    %221 = vmatpush1.bf16.msra.mxu0 0
    %222 = vmatprep.subr.bf16.mxu0 0
    %223 = vmatpush1.bf16.msra.mxu0 %v203
    %224 = vmatprep.subr.bf16.mxu0 0
    %225 = vmatpush1.bf16.msra.mxu0 %v202
    %226 = vmatprep.subr.bf16.mxu0 0
    %227 = vmatpush2.bf16.msra.mxu0 0
    %228 = vmatprep.subr.bf16.mxu0 0
    %229 = vmatpush2.bf16.msra.mxu0 0
    %230 = vmatprep.subr.bf16.mxu0 0
    %231 = vmatpush2.bf16.msra.mxu0 0
    %232 = vmatprep.subr.bf16.mxu0 0
    %233 = vmatpush2.bf16.msra.mxu0 0
    %234 = vmatprep.subr.bf16.mxu0 0
    %235 = vmatpush2.bf16.msra.mxu0 0
    %236 = vmatprep.subr.bf16.mxu0 0
    %237 = vmatpush2.bf16.msra.mxu0 0
    %238 = vmatprep.subr.bf16.mxu0 0
    %239 = vmatpush2.bf16.msra.mxu0 0
    %240 = vmatprep.subr.bf16.mxu0 0
    %241 = vmatpush2.bf16.msra.mxu0 0
    %242 = vmatprep.mubr.bf16.mxu0 0
    %243 = vmatmul.mubr.bf16.gmra.mxu0 %v208
    %v244 = vpop.f32.mrf.mxu0
    %v245 = vadd.f32 %v192, %v244
    %v246 = vpop.f32.mrf.mxu0
    %v247 = vpop.f32.mrf.mxu0
    %v248 = vadd.f32 %v192, %v247
    %v249 = vpop.f32.mrf.mxu0
    %250 = vdwg.mxu0
    %v251 = vmax.f32 %v245, 0.0
    %v252 = vmax.f32 %v248, 0.0
    %v253 = vpack.c.bf16 %v252, %v251
    %v254 = vld [vmem:[#allocation8] sm:$0xf]
    %v255 = vld [vmem:[#allocation8 + $0x4] sm:$0xf]
    %v256 = vld [vmem:[#allocation8 + $0x8] sm:$0xf]
    %v257 = vld [vmem:[#allocation8 + $0xc] sm:$0xf]
    %v258 = vld [vmem:[%s6] sm:$0x1]
    %v260 = vlaneseq
    %v261 = vshrl.u32 %v260, 7
    %v262 = vsub.s32 0, %v261
    %v263 = vrot.slane %v258, %v262
    %v269 = vunpack.c.l.b16 %v254
    %v270 = vunpack.c.l.b16 %v255
    %v271 = vunpack.c.l.b16 %v256
    %v272 = vunpack.c.l.b16 %v257
    %v273 = vpack.c.b16 %v270, %v269
    %v274 = vpack.c.b16 %v272, %v271
    %v278 = vsel %vm206, %v253, 0
    %280 = vmatprep.subr.bf16.mxu0 0
    %281 = vmatpush1.bf16.msra.mxu0 0
    %282 = vmatprep.subr.bf16.mxu0 0
    %283 = vmatpush1.bf16.msra.mxu0 0
    %284 = vmatprep.subr.bf16.mxu0 0
    %285 = vmatpush1.bf16.msra.mxu0 0
    %286 = vmatprep.subr.bf16.mxu0 0
    %287 = vmatpush1.bf16.msra.mxu0 0
    %288 = vmatprep.subr.bf16.mxu0 0
    %289 = vmatpush1.bf16.msra.mxu0 0
    %290 = vmatprep.subr.bf16.mxu0 0
    %291 = vmatpush1.bf16.msra.mxu0 0
    %292 = vmatprep.subr.bf16.mxu0 0
    %293 = vmatpush1.bf16.msra.mxu0 %v274
    %294 = vmatprep.subr.bf16.mxu0 0
    %295 = vmatpush1.bf16.msra.mxu0 %v273
    %296 = vmatprep.subr.bf16.mxu0 0
    %297 = vmatpush2.bf16.msra.mxu0 0
    %298 = vmatprep.subr.bf16.mxu0 0
    %299 = vmatpush2.bf16.msra.mxu0 0
    %300 = vmatprep.subr.bf16.mxu0 0
    %301 = vmatpush2.bf16.msra.mxu0 0
    %302 = vmatprep.subr.bf16.mxu0 0
    %303 = vmatpush2.bf16.msra.mxu0 0
    %304 = vmatprep.subr.bf16.mxu0 0
    %305 = vmatpush2.bf16.msra.mxu0 0
    %306 = vmatprep.subr.bf16.mxu0 0
    %307 = vmatpush2.bf16.msra.mxu0 0
    %308 = vmatprep.subr.bf16.mxu0 0
    %309 = vmatpush2.bf16.msra.mxu0 0
    %310 = vmatprep.subr.bf16.mxu0 0
    %311 = vmatpush2.bf16.msra.mxu0 0
    %312 = vmatprep.mubr.bf16.mxu0 0
    %313 = vmatmul.mubr.bf16.gmra.mxu0 %v278
    %v314 = vpop.f32.mrf.mxu0
    %v315 = vadd.f32 %v263, %v314
    %v316 = vpop.f32.mrf.mxu0
    %v317 = vpop.f32.mrf.mxu0
    %v318 = vadd.f32 %v263, %v317
    %v319 = vpop.f32.mrf.mxu0
    %320 = vdwg.mxu0
    %321 = vst.msk [vmem:[#allocation10] sm:$0xff] %vm206, %v315
    %322 = vst.msk [vmem:[#allocation10 + $0x8] sm:$0xff] %vm206, %v318
    // Predicated region
    $region46: #{tpu_custom_call.1} parent=1 // pred_check
      _
    $region47: #{tpu_custom_call.1} parent=1 // pred_check_branch
      %324 = sbr.rel (0) target = $region49
    $region48: #{tpu_custom_call.1} parent=1 // pred_region
      %s326 = ssub.s32 256, 256
      %327 = vsyncadd [#allocation4], %s326
      %s328 = sshll.u32 [#allocation10], 4
      %s329 = int_to_ptr.vmem [resolvable:$true] %s328
      %334 = dma.vmem_to_hbm [thread:$0]  %s329, 256, %s7, [#allocation4], 128, 128, 8
    $region49: #{tpu_custom_call.1} parent=1 // pred_fallthru
      _
    // Predicated region
    $region50: #{tpu_custom_call.1} parent=1 // pred_check
      _
    $region51: #{tpu_custom_call.1} parent=1 // pred_check_branch
      %336 = sbr.rel (0) target = $region53
    $region52: #{tpu_custom_call.1} parent=1 // pred_region
      %337 = dma.done [#allocation4], 256
    $region53: #{tpu_custom_call.1} parent=1 // pred_fallthru
      _
    %338 = vsyncpa [#allocation3], 1
    %339 = vsyncpa [#allocation6], 1
    %340 = vsyncpa [#allocation9], 1
    %341 = vsyncpa [#allocation4], 1

</llo_original>
